<compile_context>
chip_gen: v7x
topology: tpu7x:2x2x1
jax: 0.10.0
libtpu: 0.0.40
codegen_flags: <defaults>
</compile_context>

<pallas_src>
import functools

import jax
import jax.numpy as jnp
import numpy as np
from jax import lax
from jax.experimental import pallas as pl
from jax.experimental.pallas import tpu as pltpu

KSIZE = 4            # every conv in the discriminator is 4x4
NEG_SLOPE = 0.2      # LeakyReLU slope
IN_EPS = 1e-5        # nn.InstanceNorm2d default eps
LANE = 128           # TPU lane width
MAX_TILE_ROWS = 256  # P-tile row count target (multiple of 8)


def _round_up(x, m):
    return (x + m - 1) // m * m


def _cdiv(a, b):
    return -(-a // b)


def _vmem_limit_bytes(need_bytes):
    """Per-layer VMEM request: actual block need (with margin), capped at 3/4
    of physical VMEM (64 MiB/TC on v7x, 128 MiB on v5e/v6e)."""
    try:
        cap = int(pltpu.get_tpu_info().vmem_capacity_bytes)
    except Exception:
        cap = 64 << 20                      # conservative: v7x per-TC VMEM
    return int(min(max(need_bytes, 8 << 20), cap * 3 // 4))


def _cost_estimate(flops, transcendentals, bytes_accessed):
    try:
        return pl.CostEstimate(flops=int(flops),
                               transcendentals=int(transcendentals),
                               bytes_accessed=int(bytes_accessed))
    except Exception:
        return None


# --------------------------------------------------------------------------
# Pallas kernel: fused 4x4 conv (tap matmuls over P-tiles) + bias +
# optional InstanceNorm (single-pass stats) + LeakyReLU / sigmoid.
# Grid = (batch sample, Cout tile); both axes "parallel".
# --------------------------------------------------------------------------
def _conv_layer_kernel(x_ref, w_ref, b_ref, o_ref, s1_ref, s2_ref, *,
                       taps, tp, n_tiles, ws, wo, p_rows, count, use_in, act):
    """Refs (per (sample, cout-tile) grid step):
      x_ref: (n_sub, rows_in, K)     bf16  stride-phase sub-images (rows flat)
                                           or the packed-tap LHS (n_sub == 1)
      w_ref: (n_taps, K, Cout_tile)  bf16
      b_ref: (1, Cout_tile)          f32
      o_ref: (P_pad, Cout_tile)      bf16  (rows >= p_rows / cols >= wo = junk)
      s1/s2: (1, Cout_tile)          f32   InstanceNorm stat accumulators
    """
    cout_t = o_ref.shape[-1]
    bias_b = jnp.broadcast_to(b_ref[...], (tp, cout_t)).astype(jnp.float32)

    def conv_tile(row0):
        acc = bias_b
        for ti, (sub, off) in enumerate(taps):
            a = x_ref[sub, pl.ds(row0 + off, tp), :]
            acc = acc + jnp.dot(a, w_ref[ti], preferred_element_type=jnp.float32)
        return acc

    def row_mask(row0):
        r = row0 + lax.broadcasted_iota(jnp.int32, (tp, 1), 0)
        return jnp.logical_and(r < p_rows, (r % ws) < wo)

    def for_each_tile(fn):
        if n_tiles <= 8:                       # short loops: static unroll
            for t in range(n_tiles):
                fn(t * tp)
        else:
            def body(t, _):
                fn(pl.multiple_of(t * tp, 8))
                return 0
            lax.fori_loop(0, n_tiles, body, 0)

    if use_in:
        s1_ref[...] = jnp.zeros_like(s1_ref)
        s2_ref[...] = jnp.zeros_like(s2_ref)

        # Pass 1: conv + bias per tile, store pre-norm bf16, accumulate stats.
        def pass1(row0):
            yq = conv_tile(row0).astype(o_ref.dtype)
            o_ref[pl.ds(row0, tp), :] = yq
            yf = jnp.where(row_mask(row0), yq.astype(jnp.float32), 0.0)
            s1_ref[...] += jnp.sum(yf, axis=0, keepdims=True)
            s2_ref[...] += jnp.sum(yf * yf, axis=0, keepdims=True)

        for_each_tile(pass1)

        inv_n = 1.0 / count
        mean = s1_ref[...] * inv_n
        var = jnp.maximum(s2_ref[...] * inv_n - mean * mean, 0.0)
        scale = lax.rsqrt(var + IN_EPS)
        scale_b = jnp.broadcast_to(scale, (tp, cout_t))          # hoisted
        shift_b = jnp.broadcast_to(mean * scale, (tp, cout_t))   # hoisted

        # Pass 2: normalize + LeakyReLU per tile.
        def pass2(row0):
            y = o_ref[pl.ds(row0, tp), :].astype(jnp.float32)
            y = y * scale_b - shift_b
            y = jnp.where(y >= 0, y, NEG_SLOPE * y)
            o_ref[pl.ds(row0, tp), :] = y.astype(o_ref.dtype)

        for_each_tile(pass2)
    else:
        def pass_act(row0):
            y = conv_tile(row0)
            if act == "lrelu":
                y = jnp.where(y >= 0, y, NEG_SLOPE * y)
            else:  # sigmoid: exp + approximate reciprocal both run on the EUP
                y = pl.reciprocal(1.0 + jnp.exp(-y), approx=True)
            o_ref[pl.ds(row0, tp), :] = y.astype(o_ref.dtype)

        for_each_tile(pass_act)


# --------------------------------------------------------------------------
# Per-layer wrapper: reflect pad, stride-phase decomposition, channel padding,
# optional tap packing for small Cin, then one pallas_call.
# --------------------------------------------------------------------------
def conv_layer_pallas(x, w, b, stride, *, use_in, act):
    """x: (N, H, W, Cp) bf16 NHWC, channels zero-padded (Cp >= Cin).
    w: (4, 4, Cin, Cout) f32 (HWIO), b: (Cout,) f32.
    Returns (N, Ho, Wo, Cout_pad) bf16 with zero-padded channels."""
    n, h, wdim, cp = x.shape
    cin, cout = int(w.shape[2]), int(w.shape[3])
    s = int(stride)
    cout_pad = _round_up(cout, LANE)
    cout_tile = min(cout_pad, 2 * LANE)
    n_ct = cout_pad // cout_tile

    # Reflect pad (PyTorch padding=1, padding_mode='reflect').
    xp = jnp.pad(x, ((0, 0), (1, 1), (1, 1), (0, 0)), mode="reflect")
    hp, wp = h + 2, wdim + 2
    if hp % s or wp % s:
        raise ValueError("stride-2 layers need even padded spatial dims")
    hs, ws = hp // s, wp // s
    ho = (hp - KSIZE) // s + 1
    wo = (wp - KSIZE) // s + 1
    p_rows = ho * ws                       # valid output rows (cols >= Wo junk)

    n_tiles = _cdiv(p_rows, MAX_TILE_ROWS)
    tp = _round_up(_cdiv(p_rows, n_tiles), 8)
    p_rows_pad = n_tiles * tp              # 8-aligned, tile-aligned row count
    max_off = ((KSIZE - 1) // s) * ws + (KSIZE - 1) // s
    hw_in = p_rows_pad + max_off           # rows so every tap window is in-bounds

    # Stride-phase sub-images, spatially flattened: (N, s*s, hw_in, Cp).
    xs = xp.reshape(n, hs, s, ws, s, cp).transpose(0, 2, 4, 1, 3, 5)
    xs = xs.reshape(n, s * s, hs * ws, cp)
    xs = jnp.pad(xs, ((0, 0), (0, 0), (0, hw_in - hs * ws), (0, 0)))

    wk = jnp.pad(w, ((0, 0), (0, 0), (0, cp - cin), (0, cout_pad - cout)))

    packed = cp * KSIZE * KSIZE <= 2 * LANE      # only the first (small-Cin) layer
    if packed:
        # Fold the 16 taps x Cin into the contraction dim: one matmul per tile.
        kdim = cp * KSIZE * KSIZE
        taps = ((0, 0),)
        x_in = jnp.concatenate(
            [xs[:, (kh % s) * s + (kw % s),
                (kh // s) * ws + (kw // s):(kh // s) * ws + (kw // s) + p_rows_pad, :]
             for kh in range(KSIZE) for kw in range(KSIZE)], axis=-1)
        x_in = x_in.reshape(n, 1, p_rows_pad, kdim)
        wk = wk.reshape(1, kdim, cout_pad).astype(jnp.bfloat16)
        rows_in, n_sub, n_taps = p_rows_pad, 1, 1
    else:
        # 16 taps, each a contiguous row window of one stride-phase sub-image.
        kdim = cp
        taps = tuple(((kh % s) * s + (kw % s), (kh // s) * ws + (kw // s))
                     for kh in range(KSIZE) for kw in range(KSIZE))
        x_in = xs
        wk = wk.reshape(KSIZE * KSIZE, kdim, cout_pad).astype(jnp.bfloat16)
        rows_in, n_sub, n_taps = hw_in, s * s, KSIZE * KSIZE

    b2 = jnp.pad(b, (0, cout_pad - cout)).reshape(1, cout_pad).astype(jnp.float32)

    kernel = functools.partial(
        _conv_layer_kernel, taps=taps, tp=tp, n_tiles=n_tiles, ws=ws, wo=wo,
        p_rows=p_rows, count=float(ho * wo), use_in=use_in, act=act)

    # VMEM budget: double-buffered in/out/weight blocks + per-tile working set.
    in_bytes = n_sub * rows_in * kdim * 2
    w_bytes = n_taps * kdim * cout_tile * 2
    out_bytes = p_rows_pad * cout_tile * 2
    work_bytes = tp * (kdim * 2 + cout_tile * 4) * 2
    need = 2 * (in_bytes + out_bytes + w_bytes) + work_bytes + (2 << 20)

    flops = 2 * n * n_ct * n_taps * p_rows_pad * kdim * cout_tile
    transc = n * p_rows_pad * cout_pad if act == "sigmoid" else 0
    bytes_acc = (x_in.size * 2 + wk.size * 2 + b2.size * 4
                 + n * p_rows_pad * cout_pad * 2)

    out = pl.pallas_call(
        kernel,
        out_shape=jax.ShapeDtypeStruct((n, p_rows_pad, cout_pad), jnp.bfloat16),
        grid=(n, n_ct),
        in_specs=[
            pl.BlockSpec((None, n_sub, rows_in, kdim), lambda i, j: (i, 0, 0, 0)),
            pl.BlockSpec((n_taps, kdim, cout_tile), lambda i, j: (0, 0, j)),
            pl.BlockSpec((1, cout_tile), lambda i, j: (0, j)),
        ],
        out_specs=pl.BlockSpec((None, p_rows_pad, cout_tile), lambda i, j: (i, 0, j)),
        scratch_shapes=[pltpu.VMEM((1, cout_tile), jnp.float32),
                        pltpu.VMEM((1, cout_tile), jnp.float32)],
        compiler_params=pltpu.CompilerParams(
            dimension_semantics=("parallel", "parallel"),
            vmem_limit_bytes=_vmem_limit_bytes(need)),
        cost_estimate=_cost_estimate(flops, transc, bytes_acc),
    )(x_in, wk, b2)

    # (N, P_pad, Cout_pad) -> (N, Ho, Wo, Cout_pad): drop junk rows / columns.
    return out[:, :p_rows, :].reshape(n, ho, ws, cout_pad)[:, :, :wo, :]


# --------------------------------------------------------------------------
# Parameter init (deterministic synthetic; shapes follow Discriminator.__init__)
# --------------------------------------------------------------------------
def init_params(key, in_channels, features):
    specs = [(in_channels, features[0], 2, False, "lrelu")]     # self.initial
    cin = features[0]
    for f in features[1:]:                                      # Block(...)
        stride = 1 if f == features[-1] else 2
        specs.append((cin, f, stride, True, "lrelu"))
        cin = f
    specs.append((cin, 1, 1, False, "sigmoid"))                 # final conv + sigmoid

    params = []
    for ci, co, st, use_in, act in specs:
        key, k1, k2 = jax.random.split(key, 3)
        fan_in = KSIZE * KSIZE * ci
        w = jax.random.normal(k1, (KSIZE, KSIZE, ci, co), jnp.float32) / np.sqrt(fan_in)
        bias = jax.random.normal(k2, (co,), jnp.float32) * 0.01
        params.append(dict(w=w, b=bias, stride=st, use_in=use_in, act=act))
    return params


def discriminator_forward(x_nchw, params):
    # TODO(synk): for very large images (>~448px on v7x) tile the row axis via
    # the grid (image-size-independent per-step VMEM) with a cross-step
    # two-pass InstanceNorm.
    x = jnp.transpose(x_nchw, (0, 2, 3, 1)).astype(jnp.bfloat16)  # NCHW -> NHWC
    c = x.shape[-1]
    x = jnp.pad(x, ((0, 0), (0, 0), (0, 0), (0, _round_up(c, 8) - c)))
    for p in params:
        x = conv_layer_pallas(x, p["w"], p["b"], p["stride"],
                              use_in=p["use_in"], act=p["act"])
    cout_final = int(params[-1]["w"].shape[-1])
    x = x[..., :cout_final].astype(jnp.float32)
    return jnp.transpose(x, (0, 3, 1, 2))                         # back to NCHW


# --------------------------------------------------------------------------
# Pure-JAX f32 reference (numerical validation only)
# --------------------------------------------------------------------------
def _layer_ref(x, w, b, stride, use_in, act):
    xp = jnp.pad(x, ((0, 0), (1, 1), (1, 1), (0, 0)), mode="reflect")
    y = lax.conv_general_dilated(
        xp, w, (stride, stride), "VALID",
        dimension_numbers=("NHWC", "HWIO", "NHWC")) + b
    if use_in:
        mean = jnp.mean(y, axis=(1, 2), keepdims=True)
        var = jnp.mean(jnp.square(y - mean), axis=(1, 2), keepdims=True)
        y = (y - mean) * lax.rsqrt(var + IN_EPS)
    if act == "lrelu":
        y = jnp.where(y >= 0, y, NEG_SLOPE * y)
    else:
        y = jax.nn.sigmoid(y)
    return y


def discriminator_ref(x_nchw, params):
    x = jnp.transpose(x_nchw, (0, 2, 3, 1))
    for p in params:
        x = _layer_ref(x, p["w"], p["b"], p["stride"], p["use_in"], p["act"])
    return jnp.transpose(x, (0, 3, 1, 2))


if __name__ == "__main__":
    # Small shapes: batch=2, in_channels=3, spatial=32 (smallest spatial where
    # the final two stride-1 4x4 convs keep positive output), scaled features.
    N, C, H, W = 2, 3, 32, 32
    features = [8, 16, 32, 64]

    x = jax.random.normal(jax.random.PRNGKey(0), (N, C, H, W), jnp.float32)
    params = init_params(jax.random.PRNGKey(1), C, features)

    out = jax.block_until_ready(discriminator_forward(x, params))
    assert out.shape == (N, 1, 2, 2), out.shape

    ref = discriminator_ref(x, params)
    # bf16 activations/weights in the kernel path vs f32 reference -> loose tol.
    np.testing.assert_allclose(np.asarray(out), np.asarray(ref), rtol=5e-2, atol=5e-2)

    print("KERNEL_OK")
</pallas_src>

<mosaic_0001>
module attributes {stable_mosaic.version = 11 : i64} {
  func.func @_conv_layer_kernel(%arg0: i32, %arg1: i32, %arg2: memref<1x1x272x128xbf16, #tpu.memory_space<vmem>>, %arg3: memref<1x128x128xbf16, #tpu.memory_space<vmem>>, %arg4: memref<1x128xf32, #tpu.memory_space<vmem>>, %arg5: memref<1x272x128xbf16, #tpu.memory_space<vmem>>, %arg6: memref<1x128xf32, #tpu.memory_space<vmem>>, %arg7: memref<1x128xf32, #tpu.memory_space<vmem>>) attributes {dimension_semantics = [#tpu.dimension_semantics<parallel>, #tpu.dimension_semantics<parallel>], iteration_bounds = array<i64: 2, 1>, scalar_prefetch = 0 : i64, scratch_operands = 2 : i64, tpu.core_type = #tpu.core_type<tc>, window_params = [{transform_indices = @transform_0, window_bounds = array<i64: 1, 1, 272, 128>}, {transform_indices = @transform_1, window_bounds = array<i64: 1, 128, 128>}, {transform_indices = @transform_2, window_bounds = array<i64: 1, 128>}, {transform_indices = @transform_3, window_bounds = array<i64: 1, 272, 128>}]} {
    %c0 = arith.constant 0 : index
    %c0_0 = arith.constant 0 : index
    %0 = vector.load %arg4[%c0, %c0_0] : memref<1x128xf32, #tpu.memory_space<vmem>>, vector<1x128xf32>
    %1 = vector.shape_cast %0 : vector<1x128xf32> to vector<1x128xf32>
    %2 = vector.broadcast %1 : vector<1x128xf32> to vector<136x128xf32>
    %c0_1 = arith.constant 0 : index
    %c0_2 = arith.constant 0 : index
    %c0_3 = arith.constant 0 : index
    %c0_4 = arith.constant 0 : index
    %3 = vector.load %arg2[%c0_1, %c0_2, %c0_3, %c0_4] : memref<1x1x272x128xbf16, #tpu.memory_space<vmem>>, vector<1x1x136x128xbf16>
    %4 = vector.shape_cast %3 : vector<1x1x136x128xbf16> to vector<136x128xbf16>
    %c0_5 = arith.constant 0 : index
    %c0_6 = arith.constant 0 : index
    %c0_7 = arith.constant 0 : index
    %5 = vector.load %arg3[%c0_5, %c0_6, %c0_7] : memref<1x128x128xbf16, #tpu.memory_space<vmem>>, vector<1x128x128xbf16>
    %6 = vector.shape_cast %5 : vector<1x128x128xbf16> to vector<128x128xbf16>
    %cst = arith.constant dense<0.000000e+00> : vector<136x128xf32>
    %7 = tpu.matmul %4, %6, %cst {dimension_numbers = #tpu.dot_dimension_numbers<[1], [0], [0], [1], [0, 0, 1, 1], [], []>} : vector<136x128xbf16>, vector<128x128xbf16>, vector<136x128xf32> -> vector<136x128xf32>
    %8 = arith.addf %2, %7 : vector<136x128xf32>
    %cst_8 = arith.constant 0.000000e+00 : f32
    %9 = vector.broadcast %cst_8 : f32 to vector<136x128xf32>
    %10 = arith.cmpf oge, %8, %9 : vector<136x128xf32>
    %cst_9 = arith.constant 2.000000e-01 : f32
    %11 = vector.broadcast %cst_9 : f32 to vector<136x128xf32>
    %12 = arith.mulf %11, %8 : vector<136x128xf32>
    %13 = arith.select %10, %8, %12 : vector<136x128xi1>, vector<136x128xf32>
    %14 = arith.truncf %13 : vector<136x128xf32> to vector<136x128xbf16>
    %c0_10 = arith.constant 0 : index
    %c0_11 = arith.constant 0 : index
    %c0_12 = arith.constant 0 : index
    %15 = vector.load %arg5[%c0_10, %c0_11, %c0_12] : memref<1x272x128xbf16, #tpu.memory_space<vmem>>, vector<1x136x128xbf16>
    %16 = vector.shape_cast %15 : vector<1x136x128xbf16> to vector<136x128xbf16>
    %17 = vector.shape_cast %14 : vector<136x128xbf16> to vector<1x136x128xbf16>
    tpu.vector_store %arg5[%c0_10, %c0_11, %c0_12], %17 {strides = array<i32>} : memref<1x272x128xbf16, #tpu.memory_space<vmem>>, vector<1x136x128xbf16>,
    %c0_13 = arith.constant 0 : index
    %c0_14 = arith.constant 0 : index
    %c136 = arith.constant 136 : index
    %c0_15 = arith.constant 0 : index
    %18 = vector.load %arg2[%c0_13, %c0_14, %c136, %c0_15] : memref<1x1x272x128xbf16, #tpu.memory_space<vmem>>, vector<1x1x136x128xbf16>
    %19 = vector.shape_cast %18 : vector<1x1x136x128xbf16> to vector<136x128xbf16>
    %c0_16 = arith.constant 0 : index
    %c0_17 = arith.constant 0 : index
    %c0_18 = arith.constant 0 : index
    %20 = vector.load %arg3[%c0_16, %c0_17, %c0_18] : memref<1x128x128xbf16, #tpu.memory_space<vmem>>, vector<1x128x128xbf16>
    %21 = vector.shape_cast %20 : vector<1x128x128xbf16> to vector<128x128xbf16>
    %cst_19 = arith.constant dense<0.000000e+00> : vector<136x128xf32>
    %22 = tpu.matmul %19, %21, %cst_19 {dimension_numbers = #tpu.dot_dimension_numbers<[1], [0], [0], [1], [0, 0, 1, 1], [], []>} : vector<136x128xbf16>, vector<128x128xbf16>, vector<136x128xf32> -> vector<136x128xf32>
    %23 = arith.addf %2, %22 : vector<136x128xf32>
    %cst_20 = arith.constant 0.000000e+00 : f32
    %24 = vector.broadcast %cst_20 : f32 to vector<136x128xf32>
    %25 = arith.cmpf oge, %23, %24 : vector<136x128xf32>
    %cst_21 = arith.constant 2.000000e-01 : f32
    %26 = vector.broadcast %cst_21 : f32 to vector<136x128xf32>
    %27 = arith.mulf %26, %23 : vector<136x128xf32>
    %28 = arith.select %25, %23, %27 : vector<136x128xi1>, vector<136x128xf32>
    %29 = arith.truncf %28 : vector<136x128xf32> to vector<136x128xbf16>
    %c0_22 = arith.constant 0 : index
    %c136_23 = arith.constant 136 : index
    %c0_24 = arith.constant 0 : index
    %30 = vector.load %arg5[%c0_22, %c136_23, %c0_24] : memref<1x272x128xbf16, #tpu.memory_space<vmem>>, vector<1x136x128xbf16>
    %31 = vector.shape_cast %30 : vector<1x136x128xbf16> to vector<136x128xbf16>
    %32 = vector.shape_cast %29 : vector<136x128xbf16> to vector<1x136x128xbf16>
    tpu.vector_store %arg5[%c0_22, %c136_23, %c0_24], %32 {strides = array<i32>} : memref<1x272x128xbf16, #tpu.memory_space<vmem>>, vector<1x136x128xbf16>,
    return
  }
  func.func @transform_0(%arg0: i32, %arg1: i32) -> (i32, i32, i32, i32) {
    %c0_i32 = arith.constant 0 : i32
    %c0_i32_0 = arith.constant 0 : i32
    %c0_i32_1 = arith.constant 0 : i32
    %c0_i32_2 = arith.constant 0 : i32
    return %arg0, %c0_i32, %c0_i32_0, %c0_i32_1 : i32, i32, i32, i32
  }
  func.func @transform_1(%arg0: i32, %arg1: i32) -> (i32, i32, i32) {
    %c0_i32 = arith.constant 0 : i32
    %c0_i32_0 = arith.constant 0 : i32
    %c0_i32_1 = arith.constant 0 : i32
    return %c0_i32, %c0_i32_0, %arg1 : i32, i32, i32
  }
  func.func @transform_2(%arg0: i32, %arg1: i32) -> (i32, i32) {
    %c0_i32 = arith.constant 0 : i32
    %c0_i32_0 = arith.constant 0 : i32
    return %c0_i32, %arg1 : i32, i32
  }
  func.func @transform_3(%arg0: i32, %arg1: i32) -> (i32, i32, i32) {
    %c0_i32 = arith.constant 0 : i32
    %c0_i32_0 = arith.constant 0 : i32
    return %arg0, %c0_i32, %arg1 : i32, i32, i32
  }
}

</mosaic_0001>

<llo_original>
// kernel: tpu_custom_call.1
$region0: #{tpu_custom_call.1}
  #allocation0 [shape = 'u32[]', space=smem, size = 0x4, offset = 0x4, fixed_abs, tag = 'smem constant byte address 0x4 - core index']
  #allocation1 [shape = 'u32[144,128]{1,0:T(1,128)}', space=vmem, size = 0x12000, scoped, tag = 'internal scratch']
  #allocation2 [shape = 'f32[1,128]{1,0:T(1,128)}', space=vmem, size = 0x200, scoped, tag = 'scratch operand']
  #allocation3 [shape = 'f32[1,128]{1,0:T(1,128)}', space=vmem, size = 0x200, scoped, tag = 'scratch operand']
  %s0 = inlined_call_operand.hbm [shape: bf16[2,1,272,128], index: 0, kind: input, shape index: {}]
  %s1 = inlined_call_operand.hbm [shape: bf16[1,128,128], index: 1, kind: input, shape index: {}]
  %s2 = inlined_call_operand.vmem [shape: f32[1,128], index: 2, kind: input, shape index: {}]
  %s3 = inlined_call_operand.hbm [shape: bf16[2,272,128], index: 3, kind: output, shape index: {}]
  %s4 = sld [smem:[#allocation0]]
  $region53: #{tpu_custom_call.1} parent=0
    _
  %s6 = ssub.s32 1, %s4
  %s7 = scalar_select 0, %s6, %s4
  $region1: #{tpu_custom_call.1} parent=0
    #allocation4 [shape = 'u8[139264]{0}', space=vmem, size = 0x22000, scoped, tag = 'input window, operand 0']
    #allocation5 [shape = 's32[2]{0}', space=sflag, size = 0x8, scoped, tag = 'scoped memory for tpu_custom_call.1']
    #allocation6 [shape = 's32[2]{0}', space=sflag, size = 0x8, scoped, tag = 'scoped memory for tpu_custom_call.1']
    #allocation7 [shape = 'u8[32768]{0}', space=vmem, size = 0x8000, scoped, tag = 'input window, operand 1, single buffered']
    #allocation8 [shape = 's32[1]{0}', space=sflag, size = 0x4, scoped, tag = 'scoped memory for tpu_custom_call.1']
    #allocation9 [shape = 'u8[139264]{0}', space=vmem, size = 0x22000, scoped, tag = 'output window, operand 0']
    %8 = vsyncpa [#allocation5], 0
    %s9 = scalar_lea.sflag [#allocation5], 1
    %10 = vsyncpa %s9, 0
    %11 = vsyncpa [#allocation8], 0
    %12 = vsyncpa [#allocation6], 0
    %s13 = scalar_lea.sflag [#allocation6], 1
    %14 = vsyncpa %s13, 0
    loop: start=0, step=1, limit=4
    $region2: #{tpu_custom_call.1} parent=1 // loop_pre_header
      _
    $region3: #{tpu_custom_call.1} parent=1 // loop_header
      %s16 = sphi 0, %s20
      %p17 = scmp.ge.s32.totalorder %s16, 4
      %s23 = sphi 0, %s35
      %s24 = sphi 0, %s31
      %s25 = sphi 0, %s23
      %s26 = sphi 0, %s24
      %s27 = sphi 0, %s25
      %s28 = sphi 0, %s26
      %s38 = sphi 0, %s40
      %s41 = sphi 0, %s38
      %s42 = sphi 0, %s41
      %s58 = sphi 0, %s42
      %s64 = sphi 0, %s66
      %s67 = sphi 0, %s64
      %s68 = sphi 0, %s67
      %s84 = sphi 0, %s68
      %s90 = sphi 0, %s92
      %s93 = sphi 0, %s90
      %s94 = sphi 0, %s93
      %s110 = sphi 0, %s94
      %s118 = sphi 0, %s120
      %s121 = sphi 0, %s118
      %s122 = sphi 0, %s121
      %s138 = sphi 0, %s122
    $region4: #{tpu_custom_call.1} parent=1 // loop_header_branch
      %19 = sbr.rel (%p17) target = $region8
    $region5: #{tpu_custom_call.1} parent=1 // loop_body
      %s21 = ssub.s32 %s16, 1
      %s22 = ssub.s32 %s16, 2
      %s29 = sadd.s32 1, %s24
      %p30 = scmp.ge.s32.totalorder %s29, 1
      %s31 = scalar_select %p30, 0, %s29
      %s32 = sadd.s32 1, %s23
      %s33 = scalar_select %p30, %s32, %s23
      %p34 = scmp.ge.s32.totalorder %s33, 2
      %s35 = scalar_select %p34, 0, %s33
      %s36 = ssub.s32 %s23, %s35
      %p37 = scmp.eq.s32.totalorder %s36, 0
      %s39 = sadd.s32 %s38, 1
      %s40 = scalar_select %p37, %s38, %s39
      %p43 = pneg %p37
      %p44 = scmp.eq.s32.totalorder %s16, 1
      %p45 = por %p43, %p44
      %p46 = scmp.ne.s32.totalorder %s38, %s41
      %p47 = scmp.eq.s32.totalorder %s16, 0
      %p48 = por %p46, %p47
      %p49 = scmp.ne.s32.totalorder %s38, %s41
      %p50 = scmp.eq.s32.totalorder %s21, 1
      %p51 = por %p49, %p50
      %p52 = scmp.ne.s32.totalorder %s41, %s42
      %p53 = scmp.eq.s32.totalorder %s21, 0
      %p54 = por %p52, %p53
      %p55 = scmp.ne.s32.totalorder %s41, %s42
      %p56 = scmp.eq.s32.totalorder %s22, 1
      %p57 = por %p55, %p56
      %p59 = scmp.ne.s32.totalorder %s42, %s58
      %p60 = scmp.eq.s32.totalorder %s22, 0
      %p61 = por %p59, %p60
      %s62 = ssub.s32 %s24, %s31
      %p63 = scmp.eq.s32.totalorder %s62, 0
      %s65 = sadd.s32 %s64, 1
      %s66 = scalar_select %p63, %s64, %s65
      %p69 = pneg %p63
      %p70 = scmp.eq.s32.totalorder %s16, 1
      %p71 = por %p69, %p70
      %p72 = scmp.ne.s32.totalorder %s64, %s67
      %p73 = scmp.eq.s32.totalorder %s16, 0
      %p74 = por %p72, %p73
      %p75 = scmp.ne.s32.totalorder %s64, %s67
      %p76 = scmp.eq.s32.totalorder %s21, 1
      %p77 = por %p75, %p76
      %p78 = scmp.ne.s32.totalorder %s67, %s68
      %p79 = scmp.eq.s32.totalorder %s21, 0
      %p80 = por %p78, %p79
      %p81 = scmp.ne.s32.totalorder %s67, %s68
      %p82 = scmp.eq.s32.totalorder %s22, 1
      %p83 = por %p81, %p82
      %p85 = scmp.ne.s32.totalorder %s68, %s84
      %p86 = scmp.eq.s32.totalorder %s22, 0
      %p87 = por %p85, %p86
      %s88 = ssub.s32 %s24, %s31
      %p89 = scmp.eq.s32.totalorder %s88, 0
      %s91 = sadd.s32 %s90, 1
      %s92 = scalar_select %p89, %s90, %s91
      %p95 = pneg %p89
      %p96 = scmp.eq.s32.totalorder %s16, 1
      %p97 = por %p95, %p96
      %p98 = scmp.ne.s32.totalorder %s90, %s93
      %p99 = scmp.eq.s32.totalorder %s16, 0
      %p100 = por %p98, %p99
      %p101 = scmp.ne.s32.totalorder %s90, %s93
      %p102 = scmp.eq.s32.totalorder %s21, 1
      %p103 = por %p101, %p102
      %p104 = scmp.ne.s32.totalorder %s93, %s94
      %p105 = scmp.eq.s32.totalorder %s21, 0
      %p106 = por %p104, %p105
      %p107 = scmp.ne.s32.totalorder %s93, %s94
      %p108 = scmp.eq.s32.totalorder %s22, 1
      %p109 = por %p107, %p108
      %p111 = scmp.ne.s32.totalorder %s94, %s110
      %p112 = scmp.eq.s32.totalorder %s22, 0
      %p113 = por %p111, %p112
      %s114 = ssub.s32 %s23, %s35
      %s115 = ssub.s32 %s24, %s31
      %s116 = sor.u32 %s114, %s115
      %p117 = scmp.eq.s32.totalorder %s116, 0
      %s119 = sadd.s32 %s118, 1
      %s120 = scalar_select %p117, %s118, %s119
      %p123 = pneg %p117
      %p124 = scmp.eq.s32.totalorder %s16, 1
      %p125 = por %p123, %p124
      %p126 = scmp.ne.s32.totalorder %s118, %s121
      %p127 = scmp.eq.s32.totalorder %s16, 0
      %p128 = por %p126, %p127
      %p129 = scmp.ne.s32.totalorder %s118, %s121
      %p130 = scmp.eq.s32.totalorder %s21, 1
      %p131 = por %p129, %p130
      %p132 = scmp.ne.s32.totalorder %s121, %s122
      %p133 = scmp.eq.s32.totalorder %s21, 0
      %p134 = por %p132, %p133
      %p135 = scmp.ne.s32.totalorder %s121, %s122
      %p136 = scmp.eq.s32.totalorder %s22, 1
      %p137 = por %p135, %p136
      %p139 = scmp.ne.s32.totalorder %s122, %s138
      %p140 = scmp.eq.s32.totalorder %s22, 0
      %p141 = por %p139, %p140
      %p142 = scmp.le.s32.totalorder 1, %s16
      %p143 = scmp.lt.s32.totalorder %s16, 3
      %p144 = pnand %p142, %p143
      %p145 = pneg %p144
      // Predicated region
      $region9: #{tpu_custom_call.1} parent=5 // pred_check
        _
      $region10: #{tpu_custom_call.1} parent=5 // pred_check_branch
        %147 = sbr.rel (%p144) target = $region12
      $region11: #{tpu_custom_call.1} parent=5 // pred_region
        %s148 = ssub.s32 %s16, 1
        // Predicated region
        $region13: #{tpu_custom_call.1} parent=11 // pred_check
          %p149 = pneg %p80
        $region14: #{tpu_custom_call.1} parent=11 // pred_check_branch
          %151 = sbr.rel (%p149) target = $region16
        $region15: #{tpu_custom_call.1} parent=11 // pred_region
          %s153 = ssub.s32 1024, 1024
          %154 = vsyncadd [#allocation8], %s153
          %s155 = smul.addr %s26, 64
          %s156 = scalar_lea.hbm %s1, %s155
          %s157 = sshll.u32 [#allocation7], 4
          %s158 = int_to_ptr.vmem [resolvable:$true] %s157
          %163 = dma.hbm_to_vmem [thread:$0]  %s156, 1024, %s158, [#allocation8], 64, 64, 4
        $region16: #{tpu_custom_call.1} parent=11 // pred_fallthru
          _
        // Predicated region
        $region17: #{tpu_custom_call.1} parent=11 // pred_check
          %p164 = pneg %p106
        $region18: #{tpu_custom_call.1} parent=11 // pred_check_branch
          %166 = sbr.rel (%p164) target = $region20
        $region19: #{tpu_custom_call.1} parent=11 // pred_region
          %p167 = scmp.lt.s32.totalorder %s26, 0
          %s168 = scalar_select %p167, %s26, 0
          %s169 = scalar_lea.vmem %s2, %s168
        $region20: #{tpu_custom_call.1} parent=11 // pred_fallthru
          _
      $region12: #{tpu_custom_call.1} parent=5 // pred_fallthru
        _
      %p170 = scmp.lt.s32.totalorder %s16, 2
      // Predicated region
      $region21: #{tpu_custom_call.1} parent=5 // pred_check
        %p171 = pneg %p170
      $region22: #{tpu_custom_call.1} parent=5 // pred_check_branch
        %173 = sbr.rel (%p171) target = $region24
      $region23: #{tpu_custom_call.1} parent=5 // pred_region
        // Predicated region
        $region25: #{tpu_custom_call.1} parent=23 // pred_check
          %p174 = pneg %p48
        $region26: #{tpu_custom_call.1} parent=23 // pred_check_branch
          %176 = sbr.rel (%p174) target = $region28
        $region27: #{tpu_custom_call.1} parent=23 // pred_region
          %s177 = sand.u32 %s38, 1
          %s178 = scalar_lea.sflag [#allocation5], %s177
          %s179 = sand.u32 %s38, 1
          %s180 = smul.addr %s179, 136
          %s181 = scalar_lea.vmem [#allocation4], %s180
          %s183 = ssub.s32 2176, 2176
          %184 = vsyncadd %s178, %s183
          %s185 = smul.addr %s23, 34
          %s186 = smul.addr %s185, 64
          %s187 = scalar_lea.hbm %s0, %s186
          %s188 = sshll.u32 %s181, 4
          %s189 = int_to_ptr.vmem [resolvable:$true] %s188
          %194 = dma.hbm_to_vmem [thread:$0]  %s187, 2176, %s189, %s178, 64, 64, 4
        $region28: #{tpu_custom_call.1} parent=23 // pred_fallthru
          _
      $region24: #{tpu_custom_call.1} parent=5 // pred_fallthru
        _
      %p195 = scmp.le.s32.totalorder 1, %s16
      %p196 = scmp.lt.s32.totalorder %s16, 3
      %p197 = pnand %p195, %p196
      %p198 = pneg %p197
      // Predicated region
      $region29: #{tpu_custom_call.1} parent=5 // pred_check
        _
      $region30: #{tpu_custom_call.1} parent=5 // pred_check_branch
        %200 = sbr.rel (%p197) target = $region32
      $region31: #{tpu_custom_call.1} parent=5 // pred_region
        %s201 = ssub.s32 %s16, 1
        %s202 = sand.u32 %s41, 1
        %s203 = scalar_lea.sflag [#allocation5], %s202
        %s204 = sand.u32 %s41, 1
        %s205 = smul.addr %s204, 136
        %s206 = scalar_lea.vmem [#allocation4], %s205
        // Predicated region
        $region33: #{tpu_custom_call.1} parent=31 // pred_check
          %p207 = pneg %p54
        $region34: #{tpu_custom_call.1} parent=31 // pred_check_branch
          %209 = sbr.rel (%p207) target = $region36
        $region35: #{tpu_custom_call.1} parent=31 // pred_region
          %210 = dma.done %s203, 2176
        $region36: #{tpu_custom_call.1} parent=31 // pred_fallthru
          _
        // Predicated region
        $region37: #{tpu_custom_call.1} parent=31 // pred_check
          %p211 = pneg %p80
        $region38: #{tpu_custom_call.1} parent=31 // pred_check_branch
          %213 = sbr.rel (%p211) target = $region40
        $region39: #{tpu_custom_call.1} parent=31 // pred_region
          %214 = dma.done [#allocation8], 1024
        $region40: #{tpu_custom_call.1} parent=31 // pred_fallthru
          _
        %s215 = sand.u32 %s41, 1
        %s216 = scalar_lea.sflag [#allocation5], %s215
        %s217 = sand.u32 %s41, 1
        %s218 = smul.addr %s217, 136
        %s219 = scalar_lea.vmem [#allocation4], %s218
        %p220 = pneg %p54
        %p221 = pneg %p51
        %p222 = pneg %p80
        %p223 = pneg %p77
        %p224 = scmp.lt.s32.totalorder %s26, 0
        %s225 = scalar_select %p224, %s26, 0
        %s226 = scalar_lea.vmem %s2, %s225
        %p227 = pneg %p106
        %p228 = pneg %p103
        %p229 = pneg %p134
        %p230 = pneg %p131
        %s231 = sand.u32 %s121, 1
        %s232 = scalar_lea.sflag [#allocation6], %s231
        %s233 = sand.u32 %s121, 1
        %s234 = smul.addr %s233, 136
        %s235 = scalar_lea.vmem [#allocation9], %s234
        %p236 = scmp.lt.s32.totalorder %s26, 0
        %s237 = scalar_select %p236, %s26, 0
        %s238 = scalar_lea.vmem %s2, %s237
        %v240 = vld [vmem:[%s238] sm:$0x1]
        %v242 = vlaneseq
        %v243 = vshrl.u32 %v242, 7
        %v244 = vsub.s32 0, %v243
        %v245 = vrot.slane %v240, %v244
        %v247 = vld [vmem:[%s206] sm:$0xf]
        %v248 = vld [vmem:[%s206 + $0x4] sm:$0xf]
        %v249 = vld [vmem:[%s206 + $0x8] sm:$0xf]
        %v250 = vld [vmem:[%s206 + $0xc] sm:$0xf]
        %v251 = vld [vmem:[%s206 + $0x10] sm:$0xf]
        %v252 = vld [vmem:[%s206 + $0x14] sm:$0xf]
        %v253 = vld [vmem:[%s206 + $0x18] sm:$0xf]
        %v254 = vld [vmem:[%s206 + $0x1c] sm:$0xf]
        %v255 = vld [vmem:[%s206 + $0x20] sm:$0xf]
        %v256 = vld [vmem:[%s206 + $0x24] sm:$0xf]
        %v257 = vld [vmem:[%s206 + $0x28] sm:$0xf]
        %v258 = vld [vmem:[%s206 + $0x2c] sm:$0xf]
        %v259 = vld [vmem:[%s206 + $0x30] sm:$0xf]
        %v260 = vld [vmem:[%s206 + $0x34] sm:$0xf]
        %v261 = vld [vmem:[%s206 + $0x38] sm:$0xf]
        %v262 = vld [vmem:[%s206 + $0x3c] sm:$0xf]
        %v263 = vld [vmem:[%s206 + $0x40] sm:$0xf]
        %v264 = vld [vmem:[#allocation7] sm:$0xf]
        %v265 = vld [vmem:[#allocation7 + $0x4] sm:$0xf]
        %v266 = vld [vmem:[#allocation7 + $0x8] sm:$0xf]
        %v267 = vld [vmem:[#allocation7 + $0xc] sm:$0xf]
        %v268 = vld [vmem:[#allocation7 + $0x10] sm:$0xf]
        %v269 = vld [vmem:[#allocation7 + $0x14] sm:$0xf]
        %v270 = vld [vmem:[#allocation7 + $0x18] sm:$0xf]
        %v271 = vld [vmem:[#allocation7 + $0x1c] sm:$0xf]
        %v272 = vld [vmem:[#allocation7 + $0x20] sm:$0xf]
        %v273 = vld [vmem:[#allocation7 + $0x24] sm:$0xf]
        %v274 = vld [vmem:[#allocation7 + $0x28] sm:$0xf]
        %v275 = vld [vmem:[#allocation7 + $0x2c] sm:$0xf]
        %v276 = vld [vmem:[#allocation7 + $0x30] sm:$0xf]
        %v277 = vld [vmem:[#allocation7 + $0x34] sm:$0xf]
        %v278 = vld [vmem:[#allocation7 + $0x38] sm:$0xf]
        %v279 = vld [vmem:[#allocation7 + $0x3c] sm:$0xf]
        %v297 = vunpack.c.l.b16 %v247
        %v298 = vunpack.c.l.b16 %v248
        %v299 = vunpack.c.l.b16 %v249
        %v300 = vunpack.c.l.b16 %v250
        %v301 = vunpack.c.l.b16 %v251
        %v302 = vunpack.c.l.b16 %v252
        %v303 = vunpack.c.l.b16 %v253
        %v304 = vunpack.c.l.b16 %v254
        %v305 = vunpack.c.l.b16 %v255
        %v306 = vunpack.c.l.b16 %v256
        %v307 = vunpack.c.l.b16 %v257
        %v308 = vunpack.c.l.b16 %v258
        %v309 = vunpack.c.l.b16 %v259
        %v310 = vunpack.c.l.b16 %v260
        %v311 = vunpack.c.l.b16 %v261
        %v312 = vunpack.c.l.b16 %v262
        %v313 = vunpack.c.l.b16 %v263
        %v314 = vpack.c.b16 %v298, %v297
        %v315 = vpack.c.b16 %v300, %v299
        %v316 = vpack.c.b16 %v302, %v301
        %v317 = vpack.c.b16 %v304, %v303
        %v318 = vpack.c.b16 %v306, %v305
        %v319 = vpack.c.b16 %v308, %v307
        %v320 = vpack.c.b16 %v310, %v309
        %v321 = vpack.c.b16 %v312, %v311
        %v322 = vpack.c.b16 %v313, %v313
        %v348 = vunpack.c.l.b16 %v264
        %v349 = vunpack.c.l.b16 %v265
        %v350 = vunpack.c.l.b16 %v266
        %v351 = vunpack.c.l.b16 %v267
        %v352 = vunpack.c.l.b16 %v268
        %v353 = vunpack.c.l.b16 %v269
        %v354 = vunpack.c.l.b16 %v270
        %v355 = vunpack.c.l.b16 %v271
        %v356 = vunpack.c.l.b16 %v272
        %v357 = vunpack.c.l.b16 %v273
        %v358 = vunpack.c.l.b16 %v274
        %v359 = vunpack.c.l.b16 %v275
        %v360 = vunpack.c.l.b16 %v276
        %v361 = vunpack.c.l.b16 %v277
        %v362 = vunpack.c.l.b16 %v278
        %v363 = vunpack.c.l.b16 %v279
        %v364 = vpack.c.b16 %v349, %v348
        %v365 = vpack.c.b16 %v351, %v350
        %v366 = vpack.c.b16 %v353, %v352
        %v367 = vpack.c.b16 %v355, %v354
        %v368 = vpack.c.b16 %v357, %v356
        %v369 = vpack.c.b16 %v359, %v358
        %v370 = vpack.c.b16 %v361, %v360
        %v371 = vpack.c.b16 %v363, %v362
        %380 = vmatprep.subr.bf16.mxu0 0
        %381 = vmatpush1.bf16.msra.mxu0 %v364
        %382 = vmatprep.subr.bf16.mxu0 0
        %383 = vmatpush1.bf16.msra.mxu0 %v365
        %384 = vmatprep.subr.bf16.mxu0 0
        %385 = vmatpush1.bf16.msra.mxu0 %v366
        %386 = vmatprep.subr.bf16.mxu0 0
        %387 = vmatpush1.bf16.msra.mxu0 %v367
        %388 = vmatprep.subr.bf16.mxu0 0
        %389 = vmatpush1.bf16.msra.mxu0 %v368
        %390 = vmatprep.subr.bf16.mxu0 0
        %391 = vmatpush1.bf16.msra.mxu0 %v369
        %392 = vmatprep.subr.bf16.mxu0 0
        %393 = vmatpush1.bf16.msra.mxu0 %v370
        %394 = vmatprep.subr.bf16.mxu0 0
        %395 = vmatpush1.bf16.msra.mxu0 %v371
        %396 = vmatprep.subr.bf16.mxu0 0
        %397 = vmatpush1.bf16.msra.mxu0 0
        %398 = vmatprep.subr.bf16.mxu0 0
        %399 = vmatpush1.bf16.msra.mxu0 0
        %400 = vmatprep.subr.bf16.mxu0 0
        %401 = vmatpush1.bf16.msra.mxu0 0
        %402 = vmatprep.subr.bf16.mxu0 0
        %403 = vmatpush1.bf16.msra.mxu0 0
        %404 = vmatprep.subr.bf16.mxu0 0
        %405 = vmatpush1.bf16.msra.mxu0 0
        %406 = vmatprep.subr.bf16.mxu0 0
        %407 = vmatpush1.bf16.msra.mxu0 0
        %408 = vmatprep.subr.bf16.mxu0 0
        %409 = vmatpush1.bf16.msra.mxu0 0
        %410 = vmatprep.subr.bf16.mxu0 0
        %411 = vmatpush1.bf16.msra.mxu0 0
        %412 = vmatprep.mubr.bf16.mxu0 0
        %413 = vmatmul.mubr.bf16.gmra.mrb[0].mxu0 %v314
        %v414 = vpop.f32.mrb[0].mxu0
        %v415 = vadd.f32 0.0, %v414
        %v416 = vpop.f32.mrb[0].mxu0
        %v417 = vpop.f32.mrb[0].mxu0
        %v418 = vadd.f32 0.0, %v417
        %v419 = vpop.f32.mrb[0].mxu0
        %420 = vmatprep.mubr.bf16.mxu0 0
        %421 = vmatmul.mubr.bf16.gmra.mrb[0].mxu0 %v315
        %v422 = vpop.f32.mrb[0].mxu0
        %v423 = vadd.f32 0.0, %v422
        %v424 = vpop.f32.mrb[0].mxu0
        %v425 = vpop.f32.mrb[0].mxu0
        %v426 = vadd.f32 0.0, %v425
        %v427 = vpop.f32.mrb[0].mxu0
        %428 = vmatprep.mubr.bf16.mxu0 0
        %429 = vmatmul.mubr.bf16.gmra.mrb[0].mxu0 %v316
        %v430 = vpop.f32.mrb[0].mxu0
        %v431 = vadd.f32 0.0, %v430
        %v432 = vpop.f32.mrb[0].mxu0
        %v433 = vpop.f32.mrb[0].mxu0
        %v434 = vadd.f32 0.0, %v433
        %v435 = vpop.f32.mrb[0].mxu0
        %436 = vmatprep.mubr.bf16.mxu0 0
        %437 = vmatmul.mubr.bf16.gmra.mrb[0].mxu0 %v317
        %v438 = vpop.f32.mrb[0].mxu0
        %v439 = vadd.f32 0.0, %v438
        %v440 = vpop.f32.mrb[0].mxu0
        %v441 = vpop.f32.mrb[0].mxu0
        %v442 = vadd.f32 0.0, %v441
        %v443 = vpop.f32.mrb[0].mxu0
        %444 = vmatprep.mubr.bf16.mxu0 0
        %445 = vmatmul.mubr.bf16.gmra.mrb[0].mxu0 %v318
        %v446 = vpop.f32.mrb[0].mxu0
        %v447 = vadd.f32 0.0, %v446
        %v448 = vpop.f32.mrb[0].mxu0
        %v449 = vpop.f32.mrb[0].mxu0
        %v450 = vadd.f32 0.0, %v449
        %v451 = vpop.f32.mrb[0].mxu0
        %452 = vmatprep.mubr.bf16.mxu0 0
        %453 = vmatmul.mubr.bf16.gmra.mrb[0].mxu0 %v319
        %v454 = vpop.f32.mrb[0].mxu0
        %v455 = vadd.f32 0.0, %v454
        %v456 = vpop.f32.mrb[0].mxu0
        %v457 = vpop.f32.mrb[0].mxu0
        %v458 = vadd.f32 0.0, %v457
        %v459 = vpop.f32.mrb[0].mxu0
        %460 = vmatprep.mubr.bf16.mxu0 0
        %461 = vmatmul.mubr.bf16.gmra.mrb[0].mxu0 %v320
        %v462 = vpop.f32.mrb[0].mxu0
        %v463 = vadd.f32 0.0, %v462
        %v464 = vpop.f32.mrb[0].mxu0
        %v465 = vpop.f32.mrb[0].mxu0
        %v466 = vadd.f32 0.0, %v465
        %v467 = vpop.f32.mrb[0].mxu0
        %468 = vmatprep.mubr.bf16.mxu0 0
        %469 = vmatmul.mubr.bf16.gmra.mrb[0].mxu0 %v321
        %v470 = vpop.f32.mrb[0].mxu0
        %v471 = vadd.f32 0.0, %v470
        %v472 = vpop.f32.mrb[0].mxu0
        %v473 = vpop.f32.mrb[0].mxu0
        %v474 = vadd.f32 0.0, %v473
        %v475 = vpop.f32.mrb[0].mxu0
        %476 = vmatprep.mubr.bf16.mxu0 0
        %477 = vmatmul.mubr.bf16.gmra.mrb[0].mxu0 %v322
        %v478 = vpop.f32.mrb[0].mxu0
        %v479 = vadd.f32 0.0, %v478
        %v480 = vpop.f32.mrb[0].mxu0
        %v481 = vpop.f32.mrb[0].mxu0
        %v482 = vpop.f32.mrb[0].mxu0
        %483 = vdwg.mxu0
        %v484 = vadd.f32 %v245, %v415
        %v485 = vadd.f32 %v245, %v418
        %v486 = vadd.f32 %v245, %v423
        %v487 = vadd.f32 %v245, %v426
        %v488 = vadd.f32 %v245, %v431
        %v489 = vadd.f32 %v245, %v434
        %v490 = vadd.f32 %v245, %v439
        %v491 = vadd.f32 %v245, %v442
        %v492 = vadd.f32 %v245, %v447
        %v493 = vadd.f32 %v245, %v450
        %v494 = vadd.f32 %v245, %v455
        %v495 = vadd.f32 %v245, %v458
        %v496 = vadd.f32 %v245, %v463
        %v497 = vadd.f32 %v245, %v466
        %v498 = vadd.f32 %v245, %v471
        %v499 = vadd.f32 %v245, %v474
        %v500 = vadd.f32 %v245, %v479
        %vm501 = vcmp.ge.f32.partialorder %v484, 0.0
        %vm502 = vcmp.ge.f32.partialorder %v485, 0.0
        %vm503 = vcmp.ge.f32.partialorder %v486, 0.0
        %vm504 = vcmp.ge.f32.partialorder %v487, 0.0
        %vm505 = vcmp.ge.f32.partialorder %v488, 0.0
        %vm506 = vcmp.ge.f32.partialorder %v489, 0.0
        %vm507 = vcmp.ge.f32.partialorder %v490, 0.0
        %vm508 = vcmp.ge.f32.partialorder %v491, 0.0
        %vm509 = vcmp.ge.f32.partialorder %v492, 0.0
        %vm510 = vcmp.ge.f32.partialorder %v493, 0.0
        %vm511 = vcmp.ge.f32.partialorder %v494, 0.0
        %vm512 = vcmp.ge.f32.partialorder %v495, 0.0
        %vm513 = vcmp.ge.f32.partialorder %v496, 0.0
        %vm514 = vcmp.ge.f32.partialorder %v497, 0.0
        %vm515 = vcmp.ge.f32.partialorder %v498, 0.0
        %vm516 = vcmp.ge.f32.partialorder %v499, 0.0
        %vm517 = vcmp.ge.f32.partialorder %v500, 0.0
        %v518 = vmul.f32 %v484, 0.2
        %v519 = vmul.f32 %v485, 0.2
        %v520 = vmul.f32 %v486, 0.2
        %v521 = vmul.f32 %v487, 0.2
        %v522 = vmul.f32 %v488, 0.2
        %v523 = vmul.f32 %v489, 0.2
        %v524 = vmul.f32 %v490, 0.2
        %v525 = vmul.f32 %v491, 0.2
        %v526 = vmul.f32 %v492, 0.2
        %v527 = vmul.f32 %v493, 0.2
        %v528 = vmul.f32 %v494, 0.2
        %v529 = vmul.f32 %v495, 0.2
        %v530 = vmul.f32 %v496, 0.2
        %v531 = vmul.f32 %v497, 0.2
        %v532 = vmul.f32 %v498, 0.2
        %v533 = vmul.f32 %v499, 0.2
        %v534 = vmul.f32 %v500, 0.2
        %v535 = vsel %vm501, %v484, %v518
        %v536 = vsel %vm502, %v485, %v519
        %v537 = vsel %vm503, %v486, %v520
        %v538 = vsel %vm504, %v487, %v521
        %v539 = vsel %vm505, %v488, %v522
        %v540 = vsel %vm506, %v489, %v523
        %v541 = vsel %vm507, %v490, %v524
        %v542 = vsel %vm508, %v491, %v525
        %v543 = vsel %vm509, %v492, %v526
        %v544 = vsel %vm510, %v493, %v527
        %v545 = vsel %vm511, %v494, %v528
        %v546 = vsel %vm512, %v495, %v529
        %v547 = vsel %vm513, %v496, %v530
        %v548 = vsel %vm514, %v497, %v531
        %v549 = vsel %vm515, %v498, %v532
        %v550 = vsel %vm516, %v499, %v533
        %v551 = vsel %vm517, %v500, %v534
        %v552 = vpack.c.bf16 %v536, %v535
        %v553 = vpack.c.bf16 %v538, %v537
        %v554 = vpack.c.bf16 %v540, %v539
        %v555 = vpack.c.bf16 %v542, %v541
        %v556 = vpack.c.bf16 %v544, %v543
        %v557 = vpack.c.bf16 %v546, %v545
        %v558 = vpack.c.bf16 %v548, %v547
        %v559 = vpack.c.bf16 %v550, %v549
        %v560 = vpack.c.bf16 %v551, %v551
        %v570 = vunpack.c.l.b16 %v552
        %v571 = vunpack.c.h.b16 %v552
        %v572 = vunpack.c.l.b16 %v553
        %v573 = vunpack.c.h.b16 %v553
        %v574 = vunpack.c.l.b16 %v554
        %v575 = vunpack.c.h.b16 %v554
        %v576 = vunpack.c.l.b16 %v555
        %v577 = vunpack.c.h.b16 %v555
        %v578 = vunpack.c.l.b16 %v556
        %v579 = vunpack.c.h.b16 %v556
        %v580 = vunpack.c.l.b16 %v557
        %v581 = vunpack.c.h.b16 %v557
        %v582 = vunpack.c.l.b16 %v558
        %v583 = vunpack.c.h.b16 %v558
        %v584 = vunpack.c.l.b16 %v559
        %v585 = vunpack.c.h.b16 %v559
        %v586 = vunpack.c.l.b16 %v560
        %v587 = vpack.c.b16 %v570, %v570
        %v588 = vpack.c.b16 %v571, %v571
        %v589 = vpack.c.b16 %v572, %v572
        %v590 = vpack.c.b16 %v573, %v573
        %v591 = vpack.c.b16 %v574, %v574
        %v592 = vpack.c.b16 %v575, %v575
        %v593 = vpack.c.b16 %v576, %v576
        %v594 = vpack.c.b16 %v577, %v577
        %v595 = vpack.c.b16 %v578, %v578
        %v596 = vpack.c.b16 %v579, %v579
        %v597 = vpack.c.b16 %v580, %v580
        %v598 = vpack.c.b16 %v581, %v581
        %v599 = vpack.c.b16 %v582, %v582
        %v600 = vpack.c.b16 %v583, %v583
        %v601 = vpack.c.b16 %v584, %v584
        %v602 = vpack.c.b16 %v585, %v585
        %v603 = vpack.c.b16 %v586, %v586
        %621 = vst [vmem:[%s235] sm:$0xf] %v587
        %622 = vst [vmem:[%s235 + $0x4] sm:$0xf] %v588
        %623 = vst [vmem:[%s235 + $0x8] sm:$0xf] %v589
        %624 = vst [vmem:[%s235 + $0xc] sm:$0xf] %v590
        %625 = vst [vmem:[%s235 + $0x10] sm:$0xf] %v591
        %626 = vst [vmem:[%s235 + $0x14] sm:$0xf] %v592
        %627 = vst [vmem:[%s235 + $0x18] sm:$0xf] %v593
        %628 = vst [vmem:[%s235 + $0x1c] sm:$0xf] %v594
        %629 = vst [vmem:[%s235 + $0x20] sm:$0xf] %v595
        %630 = vst [vmem:[%s235 + $0x24] sm:$0xf] %v596
        %631 = vst [vmem:[%s235 + $0x28] sm:$0xf] %v597
        %632 = vst [vmem:[%s235 + $0x2c] sm:$0xf] %v598
        %633 = vst [vmem:[%s235 + $0x30] sm:$0xf] %v599
        %634 = vst [vmem:[%s235 + $0x34] sm:$0xf] %v600
        %635 = vst [vmem:[%s235 + $0x38] sm:$0xf] %v601
        %636 = vst [vmem:[%s235 + $0x3c] sm:$0xf] %v602
        %637 = vst [vmem:[%s235 + $0x40] sm:$0xf] %v603
        %v638 = vld [vmem:[%s206 + $0x44] sm:$0xf]
        %v639 = vld [vmem:[%s206 + $0x48] sm:$0xf]
        %v640 = vld [vmem:[%s206 + $0x4c] sm:$0xf]
        %v641 = vld [vmem:[%s206 + $0x50] sm:$0xf]
        %v642 = vld [vmem:[%s206 + $0x54] sm:$0xf]
        %v643 = vld [vmem:[%s206 + $0x58] sm:$0xf]
        %v644 = vld [vmem:[%s206 + $0x5c] sm:$0xf]
        %v645 = vld [vmem:[%s206 + $0x60] sm:$0xf]
        %v646 = vld [vmem:[%s206 + $0x64] sm:$0xf]
        %v647 = vld [vmem:[%s206 + $0x68] sm:$0xf]
        %v648 = vld [vmem:[%s206 + $0x6c] sm:$0xf]
        %v649 = vld [vmem:[%s206 + $0x70] sm:$0xf]
        %v650 = vld [vmem:[%s206 + $0x74] sm:$0xf]
        %v651 = vld [vmem:[%s206 + $0x78] sm:$0xf]
        %v652 = vld [vmem:[%s206 + $0x7c] sm:$0xf]
        %v653 = vld [vmem:[%s206 + $0x80] sm:$0xf]
        %v654 = vld [vmem:[%s206 + $0x84] sm:$0xf]
        %v655 = vld [vmem:[#allocation7] sm:$0xf]
        %v656 = vld [vmem:[#allocation7 + $0x4] sm:$0xf]
        %v657 = vld [vmem:[#allocation7 + $0x8] sm:$0xf]
        %v658 = vld [vmem:[#allocation7 + $0xc] sm:$0xf]
        %v659 = vld [vmem:[#allocation7 + $0x10] sm:$0xf]
        %v660 = vld [vmem:[#allocation7 + $0x14] sm:$0xf]
        %v661 = vld [vmem:[#allocation7 + $0x18] sm:$0xf]
        %v662 = vld [vmem:[#allocation7 + $0x1c] sm:$0xf]
        %v663 = vld [vmem:[#allocation7 + $0x20] sm:$0xf]
        %v664 = vld [vmem:[#allocation7 + $0x24] sm:$0xf]
        %v665 = vld [vmem:[#allocation7 + $0x28] sm:$0xf]
        %v666 = vld [vmem:[#allocation7 + $0x2c] sm:$0xf]
        %v667 = vld [vmem:[#allocation7 + $0x30] sm:$0xf]
        %v668 = vld [vmem:[#allocation7 + $0x34] sm:$0xf]
        %v669 = vld [vmem:[#allocation7 + $0x38] sm:$0xf]
        %v670 = vld [vmem:[#allocation7 + $0x3c] sm:$0xf]
        %v688 = vunpack.c.l.b16 %v638
        %v689 = vunpack.c.l.b16 %v639
        %v690 = vunpack.c.l.b16 %v640
        %v691 = vunpack.c.l.b16 %v641
        %v692 = vunpack.c.l.b16 %v642
        %v693 = vunpack.c.l.b16 %v643
        %v694 = vunpack.c.l.b16 %v644
        %v695 = vunpack.c.l.b16 %v645
        %v696 = vunpack.c.l.b16 %v646
        %v697 = vunpack.c.l.b16 %v647
        %v698 = vunpack.c.l.b16 %v648
        %v699 = vunpack.c.l.b16 %v649
        %v700 = vunpack.c.l.b16 %v650
        %v701 = vunpack.c.l.b16 %v651
        %v702 = vunpack.c.l.b16 %v652
        %v703 = vunpack.c.l.b16 %v653
        %v704 = vunpack.c.l.b16 %v654
        %v705 = vpack.c.b16 %v689, %v688
        %v706 = vpack.c.b16 %v691, %v690
        %v707 = vpack.c.b16 %v693, %v692
        %v708 = vpack.c.b16 %v695, %v694
        %v709 = vpack.c.b16 %v697, %v696
        %v710 = vpack.c.b16 %v699, %v698
        %v711 = vpack.c.b16 %v701, %v700
        %v712 = vpack.c.b16 %v703, %v702
        %v713 = vpack.c.b16 %v704, %v704
        %v739 = vunpack.c.l.b16 %v655
        %v740 = vunpack.c.l.b16 %v656
        %v741 = vunpack.c.l.b16 %v657
        %v742 = vunpack.c.l.b16 %v658
        %v743 = vunpack.c.l.b16 %v659
        %v744 = vunpack.c.l.b16 %v660
        %v745 = vunpack.c.l.b16 %v661
        %v746 = vunpack.c.l.b16 %v662
        %v747 = vunpack.c.l.b16 %v663
        %v748 = vunpack.c.l.b16 %v664
        %v749 = vunpack.c.l.b16 %v665
        %v750 = vunpack.c.l.b16 %v666
        %v751 = vunpack.c.l.b16 %v667
        %v752 = vunpack.c.l.b16 %v668
        %v753 = vunpack.c.l.b16 %v669
        %v754 = vunpack.c.l.b16 %v670
        %v755 = vpack.c.b16 %v740, %v739
        %v756 = vpack.c.b16 %v742, %v741
        %v757 = vpack.c.b16 %v744, %v743
        %v758 = vpack.c.b16 %v746, %v745
        %v759 = vpack.c.b16 %v748, %v747
        %v760 = vpack.c.b16 %v750, %v749
        %v761 = vpack.c.b16 %v752, %v751
        %v762 = vpack.c.b16 %v754, %v753
        %771 = vmatprep.subr.bf16.mxu0 0
        %772 = vmatpush1.bf16.msra.mxu0 %v755
        %773 = vmatprep.subr.bf16.mxu0 0
        %774 = vmatpush1.bf16.msra.mxu0 %v756
        %775 = vmatprep.subr.bf16.mxu0 0
        %776 = vmatpush1.bf16.msra.mxu0 %v757
        %777 = vmatprep.subr.bf16.mxu0 0
        %778 = vmatpush1.bf16.msra.mxu0 %v758
        %779 = vmatprep.subr.bf16.mxu0 0
        %780 = vmatpush1.bf16.msra.mxu0 %v759
        %781 = vmatprep.subr.bf16.mxu0 0
        %782 = vmatpush1.bf16.msra.mxu0 %v760
        %783 = vmatprep.subr.bf16.mxu0 0
        %784 = vmatpush1.bf16.msra.mxu0 %v761
        %785 = vmatprep.subr.bf16.mxu0 0
        %786 = vmatpush1.bf16.msra.mxu0 %v762
        %787 = vmatprep.subr.bf16.mxu0 0
        %788 = vmatpush1.bf16.msra.mxu0 0
        %789 = vmatprep.subr.bf16.mxu0 0
        %790 = vmatpush1.bf16.msra.mxu0 0
        %791 = vmatprep.subr.bf16.mxu0 0
        %792 = vmatpush1.bf16.msra.mxu0 0
        %793 = vmatprep.subr.bf16.mxu0 0
        %794 = vmatpush1.bf16.msra.mxu0 0
        %795 = vmatprep.subr.bf16.mxu0 0
        %796 = vmatpush1.bf16.msra.mxu0 0
        %797 = vmatprep.subr.bf16.mxu0 0
        %798 = vmatpush1.bf16.msra.mxu0 0
        %799 = vmatprep.subr.bf16.mxu0 0
        %800 = vmatpush1.bf16.msra.mxu0 0
        %801 = vmatprep.subr.bf16.mxu0 0
        %802 = vmatpush1.bf16.msra.mxu0 0
        %803 = vmatprep.mubr.bf16.mxu0 0
        %804 = vmatmul.mubr.bf16.gmra.mrb[0].mxu0 %v705
        %v805 = vpop.f32.mrb[0].mxu0
        %v806 = vadd.f32 0.0, %v805
        %v807 = vpop.f32.mrb[0].mxu0
        %v808 = vpop.f32.mrb[0].mxu0
        %v809 = vadd.f32 0.0, %v808
        %v810 = vpop.f32.mrb[0].mxu0
        %811 = vmatprep.mubr.bf16.mxu0 0
        %812 = vmatmul.mubr.bf16.gmra.mrb[0].mxu0 %v706
        %v813 = vpop.f32.mrb[0].mxu0
        %v814 = vadd.f32 0.0, %v813
        %v815 = vpop.f32.mrb[0].mxu0
        %v816 = vpop.f32.mrb[0].mxu0
        %v817 = vadd.f32 0.0, %v816
        %v818 = vpop.f32.mrb[0].mxu0
        %819 = vmatprep.mubr.bf16.mxu0 0
        %820 = vmatmul.mubr.bf16.gmra.mrb[0].mxu0 %v707
        %v821 = vpop.f32.mrb[0].mxu0
        %v822 = vadd.f32 0.0, %v821
        %v823 = vpop.f32.mrb[0].mxu0
        %v824 = vpop.f32.mrb[0].mxu0
        %v825 = vadd.f32 0.0, %v824
        %v826 = vpop.f32.mrb[0].mxu0
        %827 = vmatprep.mubr.bf16.mxu0 0
        %828 = vmatmul.mubr.bf16.gmra.mrb[0].mxu0 %v708
        %v829 = vpop.f32.mrb[0].mxu0
        %v830 = vadd.f32 0.0, %v829
        %v831 = vpop.f32.mrb[0].mxu0
        %v832 = vpop.f32.mrb[0].mxu0
        %v833 = vadd.f32 0.0, %v832
        %v834 = vpop.f32.mrb[0].mxu0
        %835 = vmatprep.mubr.bf16.mxu0 0
        %836 = vmatmul.mubr.bf16.gmra.mrb[0].mxu0 %v709
        %v837 = vpop.f32.mrb[0].mxu0
        %v838 = vadd.f32 0.0, %v837
        %v839 = vpop.f32.mrb[0].mxu0
        %v840 = vpop.f32.mrb[0].mxu0
        %v841 = vadd.f32 0.0, %v840
        %v842 = vpop.f32.mrb[0].mxu0
        %843 = vmatprep.mubr.bf16.mxu0 0
        %844 = vmatmul.mubr.bf16.gmra.mrb[0].mxu0 %v710
        %v845 = vpop.f32.mrb[0].mxu0
        %v846 = vadd.f32 0.0, %v845
        %v847 = vpop.f32.mrb[0].mxu0
        %v848 = vpop.f32.mrb[0].mxu0
        %v849 = vadd.f32 0.0, %v848
        %v850 = vpop.f32.mrb[0].mxu0
        %851 = vmatprep.mubr.bf16.mxu0 0
        %852 = vmatmul.mubr.bf16.gmra.mrb[0].mxu0 %v711
        %v853 = vpop.f32.mrb[0].mxu0
        %v854 = vadd.f32 0.0, %v853
        %v855 = vpop.f32.mrb[0].mxu0
        %v856 = vpop.f32.mrb[0].mxu0
        %v857 = vadd.f32 0.0, %v856
        %v858 = vpop.f32.mrb[0].mxu0
        %859 = vmatprep.mubr.bf16.mxu0 0
        %860 = vmatmul.mubr.bf16.gmra.mrb[0].mxu0 %v712
        %v861 = vpop.f32.mrb[0].mxu0
        %v862 = vadd.f32 0.0, %v861
        %v863 = vpop.f32.mrb[0].mxu0
        %v864 = vpop.f32.mrb[0].mxu0
        %v865 = vadd.f32 0.0, %v864
        %v866 = vpop.f32.mrb[0].mxu0
        %867 = vmatprep.mubr.bf16.mxu0 0
        %868 = vmatmul.mubr.bf16.gmra.mrb[0].mxu0 %v713
        %v869 = vpop.f32.mrb[0].mxu0
        %v870 = vadd.f32 0.0, %v869
        %v871 = vpop.f32.mrb[0].mxu0
        %v872 = vpop.f32.mrb[0].mxu0
        %v873 = vpop.f32.mrb[0].mxu0
        %874 = vdwg.mxu0
        %v875 = vadd.f32 %v245, %v806
        %v876 = vadd.f32 %v245, %v809
        %v877 = vadd.f32 %v245, %v814
        %v878 = vadd.f32 %v245, %v817
        %v879 = vadd.f32 %v245, %v822
        %v880 = vadd.f32 %v245, %v825
        %v881 = vadd.f32 %v245, %v830
        %v882 = vadd.f32 %v245, %v833
        %v883 = vadd.f32 %v245, %v838
        %v884 = vadd.f32 %v245, %v841
        %v885 = vadd.f32 %v245, %v846
        %v886 = vadd.f32 %v245, %v849
        %v887 = vadd.f32 %v245, %v854
        %v888 = vadd.f32 %v245, %v857
        %v889 = vadd.f32 %v245, %v862
        %v890 = vadd.f32 %v245, %v865
        %v891 = vadd.f32 %v245, %v870
        %vm892 = vcmp.ge.f32.partialorder %v875, 0.0
        %vm893 = vcmp.ge.f32.partialorder %v876, 0.0
        %vm894 = vcmp.ge.f32.partialorder %v877, 0.0
        %vm895 = vcmp.ge.f32.partialorder %v878, 0.0
        %vm896 = vcmp.ge.f32.partialorder %v879, 0.0
        %vm897 = vcmp.ge.f32.partialorder %v880, 0.0
        %vm898 = vcmp.ge.f32.partialorder %v881, 0.0
        %vm899 = vcmp.ge.f32.partialorder %v882, 0.0
        %vm900 = vcmp.ge.f32.partialorder %v883, 0.0
        %vm901 = vcmp.ge.f32.partialorder %v884, 0.0
        %vm902 = vcmp.ge.f32.partialorder %v885, 0.0
        %vm903 = vcmp.ge.f32.partialorder %v886, 0.0
        %vm904 = vcmp.ge.f32.partialorder %v887, 0.0
        %vm905 = vcmp.ge.f32.partialorder %v888, 0.0
        %vm906 = vcmp.ge.f32.partialorder %v889, 0.0
        %vm907 = vcmp.ge.f32.partialorder %v890, 0.0
        %vm908 = vcmp.ge.f32.partialorder %v891, 0.0
        %v909 = vmul.f32 %v875, 0.2
        %v910 = vmul.f32 %v876, 0.2
        %v911 = vmul.f32 %v877, 0.2
        %v912 = vmul.f32 %v878, 0.2
        %v913 = vmul.f32 %v879, 0.2
        %v914 = vmul.f32 %v880, 0.2
        %v915 = vmul.f32 %v881, 0.2
        %v916 = vmul.f32 %v882, 0.2
        %v917 = vmul.f32 %v883, 0.2
        %v918 = vmul.f32 %v884, 0.2
        %v919 = vmul.f32 %v885, 0.2
        %v920 = vmul.f32 %v886, 0.2
        %v921 = vmul.f32 %v887, 0.2
        %v922 = vmul.f32 %v888, 0.2
        %v923 = vmul.f32 %v889, 0.2
        %v924 = vmul.f32 %v890, 0.2
        %v925 = vmul.f32 %v891, 0.2
        %v926 = vsel %vm892, %v875, %v909
        %v927 = vsel %vm893, %v876, %v910
        %v928 = vsel %vm894, %v877, %v911
        %v929 = vsel %vm895, %v878, %v912
        %v930 = vsel %vm896, %v879, %v913
        %v931 = vsel %vm897, %v880, %v914
        %v932 = vsel %vm898, %v881, %v915
        %v933 = vsel %vm899, %v882, %v916
        %v934 = vsel %vm900, %v883, %v917
        %v935 = vsel %vm901, %v884, %v918
        %v936 = vsel %vm902, %v885, %v919
        %v937 = vsel %vm903, %v886, %v920
        %v938 = vsel %vm904, %v887, %v921
        %v939 = vsel %vm905, %v888, %v922
        %v940 = vsel %vm906, %v889, %v923
        %v941 = vsel %vm907, %v890, %v924
        %v942 = vsel %vm908, %v891, %v925
        %v943 = vpack.c.bf16 %v927, %v926
        %v944 = vpack.c.bf16 %v929, %v928
        %v945 = vpack.c.bf16 %v931, %v930
        %v946 = vpack.c.bf16 %v933, %v932
        %v947 = vpack.c.bf16 %v935, %v934
        %v948 = vpack.c.bf16 %v937, %v936
        %v949 = vpack.c.bf16 %v939, %v938
        %v950 = vpack.c.bf16 %v941, %v940
        %v951 = vpack.c.bf16 %v942, %v942
        %v961 = vunpack.c.l.b16 %v943
        %v962 = vunpack.c.h.b16 %v943
        %v963 = vunpack.c.l.b16 %v944
        %v964 = vunpack.c.h.b16 %v944
        %v965 = vunpack.c.l.b16 %v945
        %v966 = vunpack.c.h.b16 %v945
        %v967 = vunpack.c.l.b16 %v946
        %v968 = vunpack.c.h.b16 %v946
        %v969 = vunpack.c.l.b16 %v947
        %v970 = vunpack.c.h.b16 %v947
        %v971 = vunpack.c.l.b16 %v948
        %v972 = vunpack.c.h.b16 %v948
        %v973 = vunpack.c.l.b16 %v949
        %v974 = vunpack.c.h.b16 %v949
        %v975 = vunpack.c.l.b16 %v950
        %v976 = vunpack.c.h.b16 %v950
        %v977 = vunpack.c.l.b16 %v951
        %v978 = vpack.c.b16 %v961, %v961
        %v979 = vpack.c.b16 %v962, %v962
        %v980 = vpack.c.b16 %v963, %v963
        %v981 = vpack.c.b16 %v964, %v964
        %v982 = vpack.c.b16 %v965, %v965
        %v983 = vpack.c.b16 %v966, %v966
        %v984 = vpack.c.b16 %v967, %v967
        %v985 = vpack.c.b16 %v968, %v968
        %v986 = vpack.c.b16 %v969, %v969
        %v987 = vpack.c.b16 %v970, %v970
        %v988 = vpack.c.b16 %v971, %v971
        %v989 = vpack.c.b16 %v972, %v972
        %v990 = vpack.c.b16 %v973, %v973
        %v991 = vpack.c.b16 %v974, %v974
        %v992 = vpack.c.b16 %v975, %v975
        %v993 = vpack.c.b16 %v976, %v976
        %v994 = vpack.c.b16 %v977, %v977
        %1012 = vst [vmem:[%s235 + $0x44] sm:$0xf] %v978
        %1013 = vst [vmem:[%s235 + $0x48] sm:$0xf] %v979
        %1014 = vst [vmem:[%s235 + $0x4c] sm:$0xf] %v980
        %1015 = vst [vmem:[%s235 + $0x50] sm:$0xf] %v981
        %1016 = vst [vmem:[%s235 + $0x54] sm:$0xf] %v982
        %1017 = vst [vmem:[%s235 + $0x58] sm:$0xf] %v983
        %1018 = vst [vmem:[%s235 + $0x5c] sm:$0xf] %v984
        %1019 = vst [vmem:[%s235 + $0x60] sm:$0xf] %v985
        %1020 = vst [vmem:[%s235 + $0x64] sm:$0xf] %v986
        %1021 = vst [vmem:[%s235 + $0x68] sm:$0xf] %v987
        %1022 = vst [vmem:[%s235 + $0x6c] sm:$0xf] %v988
        %1023 = vst [vmem:[%s235 + $0x70] sm:$0xf] %v989
        %1024 = vst [vmem:[%s235 + $0x74] sm:$0xf] %v990
        %1025 = vst [vmem:[%s235 + $0x78] sm:$0xf] %v991
        %1026 = vst [vmem:[%s235 + $0x7c] sm:$0xf] %v992
        %1027 = vst [vmem:[%s235 + $0x80] sm:$0xf] %v993
        %1028 = vst [vmem:[%s235 + $0x84] sm:$0xf] %v994
        %s1029 = sand.u32 %s121, 1
        %s1030 = scalar_lea.sflag [#allocation6], %s1029
        %s1031 = sand.u32 %s121, 1
        %s1032 = smul.addr %s1031, 136
        %s1033 = scalar_lea.vmem [#allocation9], %s1032
        // Predicated region
        $region41: #{tpu_custom_call.1} parent=31 // pred_check
          %p1034 = pneg %p131
        $region42: #{tpu_custom_call.1} parent=31 // pred_check_branch
          %1036 = sbr.rel (%p1034) target = $region44
        $region43: #{tpu_custom_call.1} parent=31 // pred_region
          %s1038 = ssub.s32 2176, 2176
          %1039 = vsyncadd %s1030, %s1038
          %s1040 = smul.addr %s25, 34
          %s1041 = sadd.s32 %s26, %s1040
          %s1042 = smul.addr %s1041, 64
          %s1043 = scalar_lea.hbm %s3, %s1042
          %s1044 = sshll.u32 %s1033, 4
          %s1045 = int_to_ptr.vmem [resolvable:$true] %s1044
          %1050 = dma.vmem_to_hbm [thread:$0]  %s1045, 2176, %s1043, %s1030, 64, 64, 4
        $region44: #{tpu_custom_call.1} parent=31 // pred_fallthru
          _
      $region32: #{tpu_custom_call.1} parent=5 // pred_fallthru
        _
      %p1051 = scmp.le.s32.totalorder 2, %s16
      // Predicated region
      $region45: #{tpu_custom_call.1} parent=5 // pred_check
        %p1052 = pneg %p1051
      $region46: #{tpu_custom_call.1} parent=5 // pred_check_branch
        %1054 = sbr.rel (%p1052) target = $region48
      $region47: #{tpu_custom_call.1} parent=5 // pred_region
        %s1055 = ssub.s32 %s16, 2
        // Predicated region
        $region49: #{tpu_custom_call.1} parent=47 // pred_check
          %p1056 = pneg %p137
        $region50: #{tpu_custom_call.1} parent=47 // pred_check_branch
          %1058 = sbr.rel (%p1056) target = $region52
        $region51: #{tpu_custom_call.1} parent=47 // pred_region
          %s1059 = sand.u32 %s122, 1
          %s1060 = scalar_lea.sflag [#allocation6], %s1059
          %s1061 = sand.u32 %s122, 1
          %s1062 = smul.addr %s1061, 136
          %s1063 = scalar_lea.vmem [#allocation9], %s1062
          %1064 = dma.done %s1060, 2176
        $region52: #{tpu_custom_call.1} parent=47 // pred_fallthru
          _
      $region48: #{tpu_custom_call.1} parent=5 // pred_fallthru
        _
    $region6: #{tpu_custom_call.1} parent=1 // loop_footer
      %s20 = sadd.s32 1, %s16
    $region7: #{tpu_custom_call.1} parent=1 // loop_footer_branch
      %15 = sbr.rel target = $region3
    $region8: #{tpu_custom_call.1} parent=1 // loop_exit
      _
    %1065 = vsyncpa [#allocation5], 1
    %s1066 = scalar_lea.sflag [#allocation5], 1
    %1067 = vsyncpa %s1066, 1
    %1068 = vsyncpa [#allocation8], 1
    %1069 = vsyncpa [#allocation6], 1
    %s1070 = scalar_lea.sflag [#allocation6], 1
    %1071 = vsyncpa %s1070, 1

</llo_original>
